<compile_context>
chip_gen: v7x
topology: tpu7x:2x2x1
jax: 0.10.0
libtpu: 0.0.40
codegen_flags: <defaults>
</compile_context>

<pallas_src>
import functools
from collections import namedtuple

import jax
import jax.numpy as jnp
from jax import lax
from jax.experimental import pallas as pl
from jax.experimental.pallas import tpu as pltpu

Block = namedtuple("Block", ["kernel_size", "dilation", "padding"])

C_IN_PACK = 16  # bf16 sublane packing: keeps per-tap window slices native-tile aligned


def _round_up(x, m):
    return ((x + m - 1) // m) * m


# --------------------------------- kernels ----------------------------------

def _fused_conv(x_ref, halo_ref, w_ref, tile_l, shifts):
    """All branches/taps as ONE MXU contraction.

    x_ref:    (1, C_in_pad, tile_l)  bf16  current L tile (L on lanes)
    halo_ref: (1, C_in_pad, halo_w)  bf16  start of the next tile (halo for the taps)
    w_ref:    (C_total, T*C_in_pad)  bf16  fused tap weights
    returns   (C_total, tile_l)      f32
    """
    win = jnp.concatenate([x_ref[0], halo_ref[0]], axis=-1)       # (C_in_pad, tile_l+halo)
    taps = [win[:, sh:sh + tile_l] for sh in shifts]              # static in-register slices
    xg = jnp.concatenate(taps, axis=0)                            # (T*C_in_pad, tile_l)
    return jnp.dot(w_ref[...], xg, preferred_element_type=jnp.float32)


def _stats_kernel(x_ref, halo_ref, w_ref, stats_ref, *, tile_l, shifts, l_out):
    """Pass 1: per-channel sum / sum-of-squares of the conv output, accumulated across the
    L-tile axis in the VMEM-resident output block (one write-back per batch element)."""
    l_idx = pl.program_id(1)
    conv = _fused_conv(x_ref, halo_ref, w_ref, tile_l, shifts)    # (C_total, tile_l) f32
    # Mask padded tail columns (cdiv grid) so they do not pollute the BN statistics.
    col = l_idx * tile_l + lax.broadcasted_iota(jnp.int32, (1, tile_l), 1)
    conv = jnp.where(col < l_out, conv, 0.0)
    part = jnp.concatenate(
        [jnp.sum(conv, axis=1, keepdims=True),
         jnp.sum(conv * conv, axis=1, keepdims=True)], axis=1)    # (C_total, 2)

    @pl.when(l_idx == 0)
    def _():
        stats_ref[0] = jnp.zeros_like(part)

    stats_ref[0] += part


def _apply_kernel(x_ref, halo_ref, w_ref, scale_ref, shift_ref, o_ref, *, tile_l, shifts):
    """Pass 2: recompute conv, apply folded BN scale/shift + ReLU, lane-dense store."""
    conv = _fused_conv(x_ref, halo_ref, w_ref, tile_l, shifts)    # (C_total, tile_l) f32
    y = conv * scale_ref[...] + shift_ref[...]                    # f32 epilogue (v5e-safe)
    o_ref[0] = jnp.maximum(y, 0.0).astype(o_ref.dtype)


# ------------------------------ tuning helpers -------------------------------

def _vmem_capacity_bytes():
    try:
        return int(pltpu.get_tpu_info().vmem_capacity_bytes)
    except Exception:
        return 64 * 1024 * 1024        # conservative fallback = v7x per-core VMEM


def _choose_tile_l(l_out, c_in_pad, c_total, halo_w, vmem_cap):
    """Pick the L tile from a VMEM byte budget (lane/sublane padded, double-buffered)."""
    per_col = (2 * 2 * c_in_pad * 2                      # x tile + halo view, bf16, 2 bufs
               + 2 * _round_up(c_total, 8) * 4)          # f32 output block, 2 bufs
    budget = max(vmem_cap // 8, 2 << 20)
    cap = 2048 if vmem_cap > (96 << 20) else 1024        # v5e/v6e (128 MiB) vs v7x (64 MiB)
    tile = max(128, min((budget // per_col // 128) * 128, cap))
    tile = min(tile, _round_up(l_out, 128))              # no point exceeding padded L_out
    tile = _round_up(tile, halo_w)                       # halo view must tile L evenly
    return int(tile)


def _mosaic_params(need_bytes, vmem_cap, dims):
    # Never request more scoped VMEM than physically exists (v7x: 64 MiB/core); keep ~20%
    # headroom for compiler scratch.  `need_bytes` is already lane/sublane padded.
    limit = int(min(max(4 * need_bytes, 16 << 20), int(0.8 * vmem_cap)))
    return pltpu.CompilerParams(dimension_semantics=dims, vmem_limit_bytes=limit)


# --------------------------------- wrapper -----------------------------------

def prepare_params(params, blocks):
    """Fold per-branch conv weights / BN params into fused tensors.

    Call ONCE per parameter set (outside the step loop): this is a chain of XLA pads and
    concats that should not be re-traced / re-executed on every forward call.
    """
    max_pad = max(b.padding for b in blocks)
    c_in = params[0][0].shape[1]
    c_in_pad = _round_up(c_in, C_IN_PACK)
    c_outs = [w.shape[-1] for (w, _, _, _) in params]
    c_total = sum(c_outs)
    tap_mats, shifts = [], []
    col = 0
    for (w, _b, _g, _bt), blk in zip(params, blocks):
        ksize, ci, co = w.shape
        off = max_pad - blk.padding                      # branch offset in shared padding
        for k in range(ksize):
            # (C_total, C_in_pad) tap matrix; rows outside this branch and padded input
            # channels are zero.
            tap_mats.append(jnp.pad(jnp.transpose(w[k]),
                                    ((col, c_total - col - co), (0, c_in_pad - ci))))
            shifts.append(off + k * blk.dilation)
        col += co
    w_fused = jnp.concatenate(tap_mats, axis=1).astype(jnp.bfloat16)  # (C_total, T*C_in_pad)
    gamma = jnp.concatenate([g for (_w, _b, g, _bt) in params]).astype(jnp.float32)
    beta = jnp.concatenate([bt for (_w, _b, _g, bt) in params]).astype(jnp.float32)
    # Conv1d bias shifts the activation and its batch mean identically, so it cancels
    # under training-mode BatchNorm and is not needed for the forward output.
    return dict(w_fused=w_fused, gamma=gamma, beta=beta, shifts=tuple(shifts),
                max_pad=max_pad, c_total=c_total, c_in_pad=c_in_pad)


def dilated_conv1d_forward(x_ncl, prepared, blocks, eps=1e-5):
    """Module forward. x_ncl: (N, C_in, L) f32 -> (N, C_out_total, L_out) f32."""
    N, C_in, L = x_ncl.shape
    l_outs = [L + 2 * b.padding - b.dilation * (b.kernel_size - 1) for b in blocks]
    L_out = l_outs[0]
    assert all(lo == L_out for lo in l_outs), "torch.cat requires equal branch lengths"

    w_fused = prepared["w_fused"]
    gamma, beta = prepared["gamma"], prepared["beta"]
    shifts, max_pad = prepared["shifts"], prepared["max_pad"]
    C_total, C_in_pad = prepared["c_total"], prepared["c_in_pad"]
    TC = w_fused.shape[1]
    max_shift = max(shifts)

    vmem_cap = _vmem_capacity_bytes()
    halo_w = _round_up(max(max_shift, 1), 128)
    tile_l = _choose_tile_l(L_out, C_in_pad, C_total, halo_w, vmem_cap)
    n_lt = pl.cdiv(L_out, tile_l)
    L_out_pad = n_lt * tile_l
    L_x = L_out_pad + halo_w              # padded x length so the last halo stays in-bounds
    r = tile_l // halo_w                  # halo blocks per L tile

    # NCL kept end-to-end (L on lanes): one pad + one bf16 cast, no transposes.  Channels
    # padded to the bf16 sublane pack so the in-kernel gather stays native-tile aligned.
    x_pad = jnp.pad(x_ncl, ((0, 0), (0, C_in_pad - C_in),
                            (max_pad, L_x - L - max_pad))).astype(jnp.bfloat16)

    grid = (N, n_lt)
    x_spec = pl.BlockSpec((1, C_in_pad, tile_l), lambda n, l: (n, 0, l))
    halo_spec = pl.BlockSpec((1, C_in_pad, halo_w), lambda n, l, r=r: (n, 0, (l + 1) * r))
    # TODO(synk): w/scale/shift are grid-invariant; single-buffer them via
    # pipeline_mode=pl.Buffered(1) once the weight block is large enough to matter.
    w_spec = pl.BlockSpec((C_total, TC), lambda n, l: (0, 0))
    vec_spec = pl.BlockSpec((C_total, 1), lambda n, l: (0, 0))

    # Lane/sublane-padded block bytes for the VMEM limit / cost estimates.
    x_blk = C_in_pad * tile_l * 2
    halo_blk = C_in_pad * halo_w * 2
    w_blk = _round_up(C_total, 16) * _round_up(TC, 128) * 2
    vec_blk = _round_up(C_total, 8) * 128 * 4
    out_blk = _round_up(C_total, 8) * tile_l * 4
    stats_blk = _round_up(C_total, 8) * 128 * 4
    flops = 2 * N * L_out_pad * TC * C_total

    # ---- pass 1: BN batch statistics (sum, sum of squares) of the conv output. ----------
    stats = pl.pallas_call(
        functools.partial(_stats_kernel, tile_l=tile_l, shifts=shifts, l_out=L_out),
        out_shape=jax.ShapeDtypeStruct((N, C_total, 2), jnp.float32),
        grid_spec=pltpu.PrefetchScalarGridSpec(
            num_scalar_prefetch=0, grid=grid,
            in_specs=[x_spec, halo_spec, w_spec],
            out_specs=pl.BlockSpec((1, C_total, 2), lambda n, l: (n, 0, 0))),
        compiler_params=_mosaic_params(
            2 * (x_blk + halo_blk) + 2 * w_blk + 2 * stats_blk, vmem_cap,
            ("parallel", "arbitrary")),
        cost_estimate=pl.CostEstimate(
            flops=flops, transcendentals=0,
            bytes_accessed=N * n_lt * (x_blk + halo_blk) + w_blk + N * C_total * 2 * 4),
    )(x_pad, x_pad, w_fused)

    # ---- fold BN (training-mode batch stats) into per-channel scale/shift. --------------
    cnt = float(N * L_out)
    tot = jnp.sum(stats, axis=0)                          # (C_total, 2): [sum, sum_sq]
    mean = tot[:, 0] / cnt
    # TODO(synk): E[x^2]-E[x]^2 in f32 can cancel for very large N*L; switch to Welford
    # style (count, mean, M2) per-tile partials if tighter BN-stat accuracy is required.
    var = jnp.maximum(tot[:, 1] / cnt - mean * mean, 0.0)
    inv = lax.rsqrt(var + eps)
    scale_vec = gamma * inv
    shift_vec = beta - mean * scale_vec
    scale = scale_vec.reshape(C_total, 1)
    shift = shift_vec.reshape(C_total, 1)

    # ---- pass 2: recompute conv (cheap for small C_in), apply BN + ReLU. ----------------
    # TODO(synk): for large C_in (compute-bound) emit a bf16 pre-BN slab in pass 1 and make
    # pass 2 a pure elementwise BN+ReLU kernel instead of recomputing the matmul.
    out_pad = pl.pallas_call(
        functools.partial(_apply_kernel, tile_l=tile_l, shifts=shifts),
        out_shape=jax.ShapeDtypeStruct((N, C_total, L_out_pad), jnp.float32),
        grid_spec=pltpu.PrefetchScalarGridSpec(
            num_scalar_prefetch=0, grid=grid,
            in_specs=[x_spec, halo_spec, w_spec, vec_spec, vec_spec],
            out_specs=pl.BlockSpec((1, C_total, tile_l), lambda n, l: (n, 0, l))),
        compiler_params=_mosaic_params(
            2 * (x_blk + halo_blk) + 2 * w_blk + 4 * vec_blk + 2 * out_blk, vmem_cap,
            ("parallel", "parallel")),
        cost_estimate=pl.CostEstimate(
            flops=flops, transcendentals=0,
            bytes_accessed=N * n_lt * (x_blk + halo_blk) + w_blk
                           + N * C_total * L_out_pad * 4),
    )(x_pad, x_pad, w_fused, scale, shift)

    # TODO(synk): PyTorch BatchNorm1d also updates running_mean/running_var buffers; that
    # stateful side effect is not reproduced (the forward output is unaffected).
    return out_pad[:, :, :L_out]


def init_params(key, blocks, in_channels, out_channels_total):
    """Deterministic synthetic parameters (shapes match the nn.Module __init__)."""
    c_out = int(out_channels_total / len(blocks))
    params = []
    for block in blocks:
        key, kw, kb, kg, kbeta = jax.random.split(key, 5)
        # weight stored as (K, C_in, C_out)  (PyTorch conv weight is (C_out, C_in, K))
        w = 0.1 * jax.random.normal(kw, (block.kernel_size, in_channels, c_out),
                                    jnp.float32)
        b = 0.1 * jax.random.normal(kb, (c_out,), jnp.float32)
        gamma = 1.0 + 0.1 * jax.random.normal(kg, (c_out,), jnp.float32)
        beta = 0.1 * jax.random.normal(kbeta, (c_out,), jnp.float32)
        params.append((w, b, gamma, beta))
    return params


if __name__ == "__main__":
    # Small config: two dilated "same-padding" branches.
    blocks = [Block(kernel_size=3, dilation=1, padding=1),
              Block(kernel_size=3, dilation=2, padding=2)]
    in_channels = 4
    out_channels_total = 8          # -> 4 per branch, concat back to 8
    N, L = 2, 16

    key = jax.random.PRNGKey(0)
    key, kx = jax.random.split(key)
    x = jax.random.normal(kx, (N, in_channels, L), jnp.float32)   # PyTorch NCL input

    params = init_params(key, blocks, in_channels, out_channels_total)
    prepared = prepare_params(params, blocks)      # fused weights built once, reused

    out = dilated_conv1d_forward(x, prepared, blocks)
    out = jax.block_until_ready(out)

    assert out.shape == (N, out_channels_total, L), out.shape
    assert bool(jnp.all(out >= 0.0))               # ReLU output is non-negative
    print("KERNEL_OK")
</pallas_src>

<mosaic_0001>
module attributes {stable_mosaic.version = 11 : i64} {
  func.func @_stats_kernel(%arg0: i32, %arg1: i32, %arg2: memref<1x16x128xbf16, #tpu.memory_space<vmem>>, %arg3: memref<1x16x128xbf16, #tpu.memory_space<vmem>>, %arg4: memref<8x96xbf16, #tpu.memory_space<vmem>>, %arg5: memref<1x8x2xf32, #tpu.memory_space<vmem>>) attributes {dimension_semantics = [#tpu.dimension_semantics<parallel>, #tpu.dimension_semantics<arbitrary>], iteration_bounds = array<i64: 2, 1>, scalar_prefetch = 0 : i64, scratch_operands = 0 : i64, tpu.core_type = #tpu.core_type<tc>, window_params = [{transform_indices = @transform_0, window_bounds = array<i64: 1, 16, 128>}, {transform_indices = @transform_1, window_bounds = array<i64: 1, 16, 128>}, {pipeline_mode = #tpu.pipeline_mode<synchronous>, transform_indices = @transform_2, window_bounds = array<i64: 8, 96>}, {transform_indices = @transform_3, window_bounds = array<i64: 1, 8, 2>}]} {
    %c0 = arith.constant 0 : index
    %c0_0 = arith.constant 0 : index
    %c0_1 = arith.constant 0 : index
    %0 = vector.load %arg2[%c0, %c0_0, %c0_1] : memref<1x16x128xbf16, #tpu.memory_space<vmem>>, vector<1x16x128xbf16>
    %1 = vector.shape_cast %0 : vector<1x16x128xbf16> to vector<16x128xbf16>
    %c0_2 = arith.constant 0 : index
    %c0_3 = arith.constant 0 : index
    %c0_4 = arith.constant 0 : index
    %2 = vector.load %arg3[%c0_2, %c0_3, %c0_4] : memref<1x16x128xbf16, #tpu.memory_space<vmem>>, vector<1x16x128xbf16>
    %3 = vector.shape_cast %2 : vector<1x16x128xbf16> to vector<16x128xbf16>
    %4 = tpu.concatenate %1, %3 in 1 : vector<16x128xbf16>, vector<16x128xbf16> -> vector<16x256xbf16>
    %5 = vector.extract_strided_slice %4 {offsets = [0, 1], sizes = [16, 128], strides = [1, 1]} : vector<16x256xbf16> to vector<16x128xbf16>
    %6 = vector.extract_strided_slice %4 {offsets = [0, 2], sizes = [16, 128], strides = [1, 1]} : vector<16x256xbf16> to vector<16x128xbf16>
    %7 = vector.extract_strided_slice %4 {offsets = [0, 3], sizes = [16, 128], strides = [1, 1]} : vector<16x256xbf16> to vector<16x128xbf16>
    %8 = vector.extract_strided_slice %4 {offsets = [0, 0], sizes = [16, 128], strides = [1, 1]} : vector<16x256xbf16> to vector<16x128xbf16>
    %9 = vector.extract_strided_slice %4 {offsets = [0, 2], sizes = [16, 128], strides = [1, 1]} : vector<16x256xbf16> to vector<16x128xbf16>
    %10 = vector.extract_strided_slice %4 {offsets = [0, 4], sizes = [16, 128], strides = [1, 1]} : vector<16x256xbf16> to vector<16x128xbf16>
    %11 = tpu.concatenate %5, %6, %7, %8, %9, %10 in 0 : vector<16x128xbf16>, vector<16x128xbf16>, vector<16x128xbf16>, vector<16x128xbf16>, vector<16x128xbf16>, vector<16x128xbf16> -> vector<96x128xbf16>
    %c0_5 = arith.constant 0 : index
    %c0_6 = arith.constant 0 : index
    %12 = vector.load %arg4[%c0_5, %c0_6] : memref<8x96xbf16, #tpu.memory_space<vmem>>, vector<8x96xbf16>
    %cst = arith.constant dense<0.000000e+00> : vector<8x128xf32>
    %13 = tpu.matmul %12, %11, %cst {dimension_numbers = #tpu.dot_dimension_numbers<[1], [0], [0], [1], [0, 0, 1, 1], [], []>} : vector<8x96xbf16>, vector<96x128xbf16>, vector<8x128xf32> -> vector<8x128xf32>
    %c128_i32 = arith.constant 128 : i32
    %14 = arith.muli %arg1, %c128_i32 : i32
    %15 = tpu.iota {dimensions = array<i32: 1>} : vector<1x128xi32>
    %16 = vector.broadcast %14 : i32 to vector<1x128xi32>
    %17 = arith.addi %16, %15 : vector<1x128xi32>
    %c16_i32 = arith.constant 16 : i32
    %18 = vector.broadcast %c16_i32 : i32 to vector<1x128xi32>
    %19 = arith.cmpi slt, %17, %18 : vector<1x128xi32>
    %cst_7 = arith.constant 0.000000e+00 : f32
    %20 = vector.shape_cast %19 : vector<1x128xi1> to vector<1x128xi1>
    %21 = vector.broadcast %20 : vector<1x128xi1> to vector<8x128xi1>
    %22 = vector.broadcast %cst_7 : f32 to vector<8x128xf32>
    %23 = arith.select %21, %13, %22 : vector<8x128xi1>, vector<8x128xf32>
    %cst_8 = arith.constant dense<0.000000e+00> : vector<8xf32>
    %24 = vector.multi_reduction <add>, %23, %cst_8 [1] : vector<8x128xf32> to vector<8xf32>
    %25 = vector.shape_cast %24 : vector<8xf32> to vector<8x1xf32>
    %26 = arith.mulf %23, %23 : vector<8x128xf32>
    %cst_9 = arith.constant dense<0.000000e+00> : vector<8xf32>
    %27 = vector.multi_reduction <add>, %26, %cst_9 [1] : vector<8x128xf32> to vector<8xf32>
    %28 = vector.shape_cast %27 : vector<8xf32> to vector<8x1xf32>
    %29 = tpu.concatenate %25, %28 in 1 : vector<8x1xf32>, vector<8x1xf32> -> vector<8x2xf32>
    %c0_i32 = arith.constant 0 : i32
    %30 = arith.cmpi eq, %arg1, %c0_i32 : i32
    %31 = arith.extui %30 : i1 to i32
    %c0_i32_10 = arith.constant 0 : i32
    %32 = arith.cmpi ne, %31, %c0_i32_10 : i32
    scf.if %32 {
      %cst_17 = arith.constant 0.000000e+00 : f32
      %39 = vector.broadcast %cst_17 : f32 to vector<8x2xf32>
      %c0_18 = arith.constant 0 : index
      %c0_19 = arith.constant 0 : index
      %c0_20 = arith.constant 0 : index
      %40 = vector.load %arg5[%c0_18, %c0_19, %c0_20] : memref<1x8x2xf32, #tpu.memory_space<vmem>>, vector<1x8x2xf32>
      %41 = vector.shape_cast %40 : vector<1x8x2xf32> to vector<8x2xf32>
      %42 = vector.shape_cast %39 : vector<8x2xf32> to vector<1x8x2xf32>
      tpu.vector_store %arg5[%c0_18, %c0_19, %c0_20], %42 {strides = array<i32>} : memref<1x8x2xf32, #tpu.memory_space<vmem>>, vector<1x8x2xf32>,
    } else {
    }
    %c0_11 = arith.constant 0 : index
    %c0_12 = arith.constant 0 : index
    %c0_13 = arith.constant 0 : index
    %33 = vector.load %arg5[%c0_11, %c0_12, %c0_13] : memref<1x8x2xf32, #tpu.memory_space<vmem>>, vector<1x8x2xf32>
    %34 = vector.shape_cast %33 : vector<1x8x2xf32> to vector<8x2xf32>
    %35 = arith.addf %34, %29 : vector<8x2xf32>
    %c0_14 = arith.constant 0 : index
    %c0_15 = arith.constant 0 : index
    %c0_16 = arith.constant 0 : index
    %36 = vector.load %arg5[%c0_14, %c0_15, %c0_16] : memref<1x8x2xf32, #tpu.memory_space<vmem>>, vector<1x8x2xf32>
    %37 = vector.shape_cast %36 : vector<1x8x2xf32> to vector<8x2xf32>
    %38 = vector.shape_cast %35 : vector<8x2xf32> to vector<1x8x2xf32>
    tpu.vector_store %arg5[%c0_14, %c0_15, %c0_16], %38 {strides = array<i32>} : memref<1x8x2xf32, #tpu.memory_space<vmem>>, vector<1x8x2xf32>,
    return
  }
  func.func @transform_0(%arg0: i32, %arg1: i32) -> (i32, i32, i32) {
    %c0_i32 = arith.constant 0 : i32
    %c0_i32_0 = arith.constant 0 : i32
    return %arg0, %c0_i32, %arg1 : i32, i32, i32
  }
  func.func @transform_1(%arg0: i32, %arg1: i32) -> (i32, i32, i32) {
    %c1_i32 = arith.constant 1 : i32
    %0 = arith.addi %arg1, %c1_i32 : i32
    %c1_i32_0 = arith.constant 1 : i32
    %1 = arith.muli %0, %c1_i32_0 : i32
    %c0_i32 = arith.constant 0 : i32
    %c0_i32_1 = arith.constant 0 : i32
    return %arg0, %c0_i32, %1 : i32, i32, i32
  }
  func.func @transform_2(%arg0: i32, %arg1: i32) -> (i32, i32) {
    %c0_i32 = arith.constant 0 : i32
    %c0_i32_0 = arith.constant 0 : i32
    %c0_i32_1 = arith.constant 0 : i32
    return %c0_i32, %c0_i32_0 : i32, i32
  }
  func.func @transform_3(%arg0: i32, %arg1: i32) -> (i32, i32, i32) {
    %c0_i32 = arith.constant 0 : i32
    %c0_i32_0 = arith.constant 0 : i32
    %c0_i32_1 = arith.constant 0 : i32
    return %arg0, %c0_i32, %c0_i32_0 : i32, i32, i32
  }
}

</mosaic_0001>

<llo_original>
// kernel: tpu_custom_call.1
$region0: #{tpu_custom_call.1}
  #allocation0 [shape = 'u32[]', space=smem, size = 0x4, offset = 0x4, fixed_abs, tag = 'smem constant byte address 0x4 - core index']
  #allocation1 [shape = 'u32[144,128]{1,0:T(1,128)}', space=vmem, size = 0x12000, scoped, tag = 'internal scratch']
  %s0 = inlined_call_operand.hbm [shape: bf16[2,16,256], index: 0, kind: input, shape index: {}]
  %s1 = inlined_call_operand.hbm [shape: bf16[2,16,256], index: 1, kind: input, shape index: {}]
  %s2 = inlined_call_operand.vmem [shape: bf16[8,96], index: 2, kind: input, shape index: {}]
  %s3 = inlined_call_operand.vmem [shape: f32[2,8,2], index: 3, kind: output, shape index: {}]
  %s4 = sld [smem:[#allocation0]]
  $region57: #{tpu_custom_call.1} parent=0
    _
  %s6 = ssub.s32 1, %s4
  %s7 = scalar_select 0, %s6, %s4
  $region1: #{tpu_custom_call.1} parent=0
    #allocation2 [shape = 'u8[8192]{0}', space=vmem, size = 0x2000, scoped, tag = 'input window, operand 0']
    #allocation3 [shape = 's32[2]{0}', space=sflag, size = 0x8, scoped, tag = 'scoped memory for tpu_custom_call.1']
    #allocation4 [shape = 'u8[8192]{0}', space=vmem, size = 0x2000, scoped, tag = 'input window, operand 1']
    #allocation5 [shape = 's32[2]{0}', space=sflag, size = 0x8, scoped, tag = 'scoped memory for tpu_custom_call.1']
    %8 = vsyncpa [#allocation3], 0
    %s9 = scalar_lea.sflag [#allocation3], 1
    %10 = vsyncpa %s9, 0
    %11 = vsyncpa [#allocation5], 0
    %s12 = scalar_lea.sflag [#allocation5], 1
    %13 = vsyncpa %s12, 0
    loop: start=0, step=1, limit=4
    $region2: #{tpu_custom_call.1} parent=1 // loop_pre_header
      _
    $region3: #{tpu_custom_call.1} parent=1 // loop_header
      %s15 = sphi 0, %s19
      %p16 = scmp.ge.s32.totalorder %s15, 4
      %s22 = sphi 0, %s34
      %s23 = sphi 0, %s30
      %s24 = sphi 0, %s22
      %s25 = sphi 0, %s23
      %s26 = sphi 0, %s24
      %s27 = sphi 0, %s25
      %s39 = sphi 0, %s41
      %s42 = sphi 0, %s39
      %s43 = sphi 0, %s42
      %s59 = sphi 0, %s43
      %s69 = sphi 0, %s71
      %s72 = sphi 0, %s69
      %s73 = sphi 0, %s72
      %s89 = sphi 0, %s73
      %s93 = sphi 0, %s93
      %s95 = sphi 0, %s93
      %s96 = sphi 0, %s95
      %s110 = sphi 0, %s96
      %s116 = sphi 0, %s118
      %s119 = sphi 0, %s116
      %s120 = sphi 0, %s119
      %s136 = sphi 0, %s120
    $region4: #{tpu_custom_call.1} parent=1 // loop_header_branch
      %18 = sbr.rel (%p16) target = $region8
    $region5: #{tpu_custom_call.1} parent=1 // loop_body
      %s20 = ssub.s32 %s15, 1
      %s21 = ssub.s32 %s15, 2
      %s28 = sadd.s32 1, %s23
      %p29 = scmp.ge.s32.totalorder %s28, 1
      %s30 = scalar_select %p29, 0, %s28
      %s31 = sadd.s32 1, %s22
      %s32 = scalar_select %p29, %s31, %s22
      %p33 = scmp.ge.s32.totalorder %s32, 2
      %s34 = scalar_select %p33, 0, %s32
      %s35 = ssub.s32 %s22, %s34
      %s36 = ssub.s32 %s23, %s30
      %s37 = sor.u32 %s35, %s36
      %p38 = scmp.eq.s32.totalorder %s37, 0
      %s40 = sadd.s32 %s39, 1
      %s41 = scalar_select %p38, %s39, %s40
      %p44 = pneg %p38
      %p45 = scmp.eq.s32.totalorder %s15, 1
      %p46 = por %p44, %p45
      %p47 = scmp.ne.s32.totalorder %s39, %s42
      %p48 = scmp.eq.s32.totalorder %s15, 0
      %p49 = por %p47, %p48
      %p50 = scmp.ne.s32.totalorder %s39, %s42
      %p51 = scmp.eq.s32.totalorder %s20, 1
      %p52 = por %p50, %p51
      %p53 = scmp.ne.s32.totalorder %s42, %s43
      %p54 = scmp.eq.s32.totalorder %s20, 0
      %p55 = por %p53, %p54
      %p56 = scmp.ne.s32.totalorder %s42, %s43
      %p57 = scmp.eq.s32.totalorder %s21, 1
      %p58 = por %p56, %p57
      %p60 = scmp.ne.s32.totalorder %s43, %s59
      %p61 = scmp.eq.s32.totalorder %s21, 0
      %p62 = por %p60, %p61
      %s63 = sadd.s32 %s23, 1
      %s64 = sadd.s32 %s30, 1
      %s65 = ssub.s32 %s22, %s34
      %s66 = ssub.s32 %s63, %s64
      %s67 = sor.u32 %s65, %s66
      %p68 = scmp.eq.s32.totalorder %s67, 0
      %s70 = sadd.s32 %s69, 1
      %s71 = scalar_select %p68, %s69, %s70
      %p74 = pneg %p68
      %p75 = scmp.eq.s32.totalorder %s15, 1
      %p76 = por %p74, %p75
      %p77 = scmp.ne.s32.totalorder %s69, %s72
      %p78 = scmp.eq.s32.totalorder %s15, 0
      %p79 = por %p77, %p78
      %p80 = scmp.ne.s32.totalorder %s69, %s72
      %p81 = scmp.eq.s32.totalorder %s20, 1
      %p82 = por %p80, %p81
      %p83 = scmp.ne.s32.totalorder %s72, %s73
      %p84 = scmp.eq.s32.totalorder %s20, 0
      %p85 = por %p83, %p84
      %p86 = scmp.ne.s32.totalorder %s72, %s73
      %p87 = scmp.eq.s32.totalorder %s21, 1
      %p88 = por %p86, %p87
      %p90 = scmp.ne.s32.totalorder %s73, %s89
      %p91 = scmp.eq.s32.totalorder %s21, 0
      %p92 = por %p90, %p91
      %s94 = sadd.s32 %s93, 1
      %p97 = scmp.eq.s32.totalorder %s15, 1
      %p98 = scmp.ne.s32.totalorder %s93, %s95
      %p99 = scmp.eq.s32.totalorder %s15, 0
      %p100 = por %p98, %p99
      %p101 = scmp.ne.s32.totalorder %s93, %s95
      %p102 = scmp.eq.s32.totalorder %s20, 1
      %p103 = por %p101, %p102
      %p104 = scmp.ne.s32.totalorder %s95, %s96
      %p105 = scmp.eq.s32.totalorder %s20, 0
      %p106 = por %p104, %p105
      %p107 = scmp.ne.s32.totalorder %s95, %s96
      %p108 = scmp.eq.s32.totalorder %s21, 1
      %p109 = por %p107, %p108
      %p111 = scmp.ne.s32.totalorder %s96, %s110
      %p112 = scmp.eq.s32.totalorder %s21, 0
      %p113 = por %p111, %p112
      %s114 = ssub.s32 %s22, %s34
      %p115 = scmp.eq.s32.totalorder %s114, 0
      %s117 = sadd.s32 %s116, 1
      %s118 = scalar_select %p115, %s116, %s117
      %p121 = pneg %p115
      %p122 = scmp.eq.s32.totalorder %s15, 1
      %p123 = por %p121, %p122
      %p124 = scmp.ne.s32.totalorder %s116, %s119
      %p125 = scmp.eq.s32.totalorder %s15, 0
      %p126 = por %p124, %p125
      %p127 = scmp.ne.s32.totalorder %s116, %s119
      %p128 = scmp.eq.s32.totalorder %s20, 1
      %p129 = por %p127, %p128
      %p130 = scmp.ne.s32.totalorder %s119, %s120
      %p131 = scmp.eq.s32.totalorder %s20, 0
      %p132 = por %p130, %p131
      %p133 = scmp.ne.s32.totalorder %s119, %s120
      %p134 = scmp.eq.s32.totalorder %s21, 1
      %p135 = por %p133, %p134
      %p137 = scmp.ne.s32.totalorder %s120, %s136
      %p138 = scmp.eq.s32.totalorder %s21, 0
      %p139 = por %p137, %p138
      %p140 = scmp.le.s32.totalorder 1, %s15
      %p141 = scmp.lt.s32.totalorder %s15, 3
      %p142 = pnand %p140, %p141
      %p143 = pneg %p142
      // Predicated region
      $region9: #{tpu_custom_call.1} parent=5 // pred_check
        _
      $region10: #{tpu_custom_call.1} parent=5 // pred_check_branch
        %145 = sbr.rel (%p142) target = $region12
      $region11: #{tpu_custom_call.1} parent=5 // pred_region
        %s146 = ssub.s32 %s15, 1
        // Predicated region
        $region13: #{tpu_custom_call.1} parent=11 // pred_check
          %p147 = pneg %p106
        $region14: #{tpu_custom_call.1} parent=11 // pred_check_branch
          %149 = sbr.rel (%p147) target = $region16
        $region15: #{tpu_custom_call.1} parent=11 // pred_region
          _
        $region16: #{tpu_custom_call.1} parent=11 // pred_fallthru
          _
      $region12: #{tpu_custom_call.1} parent=5 // pred_fallthru
        _
      %p150 = scmp.lt.s32.totalorder %s15, 2
      // Predicated region
      $region17: #{tpu_custom_call.1} parent=5 // pred_check
        %p151 = pneg %p150
      $region18: #{tpu_custom_call.1} parent=5 // pred_check_branch
        %153 = sbr.rel (%p151) target = $region20
      $region19: #{tpu_custom_call.1} parent=5 // pred_region
        // Predicated region
        $region21: #{tpu_custom_call.1} parent=19 // pred_check
          %p154 = pneg %p49
        $region22: #{tpu_custom_call.1} parent=19 // pred_check_branch
          %156 = sbr.rel (%p154) target = $region24
        $region23: #{tpu_custom_call.1} parent=19 // pred_region
          %s157 = sand.u32 %s39, 1
          %s158 = scalar_lea.sflag [#allocation3], %s157
          %s159 = sand.u32 %s39, 1
          %s160 = smul.addr %s159, 8
          %s161 = scalar_lea.vmem [#allocation2], %s160
          %s163 = ssub.s32 128, 128
          %164 = vsyncadd %s158, %s163
          %s165 = smul.addr %s22, 4
          %s166 = sadd.s32 %s23, %s165
          %s167 = smul.addr %s166, 64
          %s168 = scalar_lea.hbm %s0, %s167
          %s169 = sshll.u32 %s161, 4
          %s170 = int_to_ptr.vmem [resolvable:$true] %s169
          %175 = dma.hbm_to_vmem [thread:$0]  %s168, 128, %s170, %s158, 128, 64, 4
        $region24: #{tpu_custom_call.1} parent=19 // pred_fallthru
          _
        // Predicated region
        $region25: #{tpu_custom_call.1} parent=19 // pred_check
          %p176 = pneg %p79
        $region26: #{tpu_custom_call.1} parent=19 // pred_check_branch
          %178 = sbr.rel (%p176) target = $region28
        $region27: #{tpu_custom_call.1} parent=19 // pred_region
          %s179 = sand.u32 %s69, 1
          %s180 = scalar_lea.sflag [#allocation5], %s179
          %s181 = sand.u32 %s69, 1
          %s182 = smul.addr %s181, 8
          %s183 = scalar_lea.vmem [#allocation4], %s182
          %s184 = sadd.s32 %s23, 1
          %s186 = ssub.s32 128, 128
          %187 = vsyncadd %s180, %s186
          %s188 = smul.addr %s22, 4
          %s189 = sadd.s32 %s184, %s188
          %s190 = smul.addr %s189, 64
          %s191 = scalar_lea.hbm %s1, %s190
          %s192 = sshll.u32 %s183, 4
          %s193 = int_to_ptr.vmem [resolvable:$true] %s192
          %198 = dma.hbm_to_vmem [thread:$0]  %s191, 128, %s193, %s180, 128, 64, 4
        $region28: #{tpu_custom_call.1} parent=19 // pred_fallthru
          _
      $region20: #{tpu_custom_call.1} parent=5 // pred_fallthru
        _
      %p199 = scmp.le.s32.totalorder 1, %s15
      %p200 = scmp.lt.s32.totalorder %s15, 3
      %p201 = pnand %p199, %p200
      %p202 = pneg %p201
      // Predicated region
      $region29: #{tpu_custom_call.1} parent=5 // pred_check
        _
      $region30: #{tpu_custom_call.1} parent=5 // pred_check_branch
        %204 = sbr.rel (%p201) target = $region32
      $region31: #{tpu_custom_call.1} parent=5 // pred_region
        %s205 = ssub.s32 %s15, 1
        %s206 = sand.u32 %s42, 1
        %s207 = scalar_lea.sflag [#allocation3], %s206
        %s208 = sand.u32 %s42, 1
        %s209 = smul.addr %s208, 8
        %s210 = scalar_lea.vmem [#allocation2], %s209
        // Predicated region
        $region33: #{tpu_custom_call.1} parent=31 // pred_check
          %p211 = pneg %p55
        $region34: #{tpu_custom_call.1} parent=31 // pred_check_branch
          %213 = sbr.rel (%p211) target = $region36
        $region35: #{tpu_custom_call.1} parent=31 // pred_region
          %214 = dma.done %s207, 128
        $region36: #{tpu_custom_call.1} parent=31 // pred_fallthru
          _
        %s215 = sand.u32 %s72, 1
        %s216 = scalar_lea.sflag [#allocation5], %s215
        %s217 = sand.u32 %s72, 1
        %s218 = smul.addr %s217, 8
        %s219 = scalar_lea.vmem [#allocation4], %s218
        // Predicated region
        $region37: #{tpu_custom_call.1} parent=31 // pred_check
          %p220 = pneg %p85
        $region38: #{tpu_custom_call.1} parent=31 // pred_check_branch
          %222 = sbr.rel (%p220) target = $region40
        $region39: #{tpu_custom_call.1} parent=31 // pred_region
          %223 = dma.done %s216, 128
        $region40: #{tpu_custom_call.1} parent=31 // pred_fallthru
          _
        %s224 = sand.u32 %s42, 1
        %s225 = scalar_lea.sflag [#allocation3], %s224
        %s226 = sand.u32 %s42, 1
        %s227 = smul.addr %s226, 8
        %s228 = scalar_lea.vmem [#allocation2], %s227
        %p229 = pneg %p55
        %p230 = pneg %p52
        %s231 = sand.u32 %s72, 1
        %s232 = scalar_lea.sflag [#allocation5], %s231
        %s233 = sand.u32 %s72, 1
        %s234 = smul.addr %s233, 8
        %s235 = scalar_lea.vmem [#allocation4], %s234
        %p236 = pneg %p85
        %p237 = pneg %p82
        %p238 = pneg %p106
        %p239 = pneg %p103
        %p240 = pneg %p132
        %p241 = pneg %p129
        %p242 = scmp.lt.s32.totalorder %s24, 1
        %s243 = scalar_select %p242, %s24, 1
        %s244 = smul.addr %s243, 8
        %s245 = scalar_lea.vmem %s3, %s244
        %s246 = sadd.s32 %s25, 1
        %p247 = scmp.lt.s32.totalorder %s24, 1
        %s248 = scalar_select %p247, %s24, 1
        %s249 = smul.addr %s248, 8
        %s250 = scalar_lea.vmem %s3, %s249
        %v252 = vld [vmem:[%s210] sm:$0xf]
        %v253 = vld [vmem:[%s210 + $0x4] sm:$0xf]
        %v254 = vld [vmem:[%s219] sm:$0xf]
        %v255 = vld [vmem:[%s219 + $0x4] sm:$0xf]
        %v258 = vunpack.c.l.b16 %v252
        %v259 = vunpack.c.l.b16 %v253
        %v260 = vpack.c.b16 %v259, %v258
        %v263 = vunpack.c.l.b16 %v254
        %v264 = vunpack.c.l.b16 %v255
        %v265 = vpack.c.b16 %v264, %v263
        %266 = vrot.lane.b32.xlu0 %v260, 127
        %v267 = vpop.permute.xlu0 %266
        %268 = vrot.lane.b32.xlu0 %v265, 127
        %v269 = vpop.permute.xlu0 %268
        %vm270 = vcmask 1039360
        %v271 = vsel %vm270, %v267, %v269
        %272 = vrot.lane.b32.xlu0 %v260, 126
        %v273 = vpop.permute.xlu0 %272
        %274 = vrot.lane.b32.xlu0 %v265, 126
        %v275 = vpop.permute.xlu0 %274
        %vm276 = vcmask 1031168
        %v277 = vsel %vm276, %v273, %v275
        %278 = vrot.lane.b32.xlu0 %v260, 1
        %v279 = vpop.permute.xlu0 %278
        %280 = vrot.lane.b32.xlu0 %v260, 125
        %v281 = vpop.permute.xlu0 %280
        %282 = vrot.lane.b32.xlu0 %v265, 125
        %v283 = vpop.permute.xlu0 %282
        %vm284 = vcmask 1022976
        %v285 = vsel %vm284, %v281, %v283
        %v286 = vld [vmem:[%s2] sm:$0xf]
        %287 = vrot.lane.b32.xlu0 %v271, 127
        %v288 = vpop.permute.xlu0 %287
        %289 = vrot.lane.b32.xlu0 %v269, 127
        %v290 = vpop.permute.xlu0 %289
        %291 = vrot.lane.b32.xlu0 %v277, 127
        %v292 = vpop.permute.xlu0 %291
        %293 = vrot.lane.b32.xlu0 %v275, 127
        %v294 = vpop.permute.xlu0 %293
        %295 = vrot.lane.b32.xlu0 %v279, 127
        %v296 = vpop.permute.xlu0 %295
        %297 = vrot.lane.b32.xlu0 %v285, 127
        %v298 = vpop.permute.xlu0 %297
        %299 = vrot.lane.b32.xlu0 %v283, 127
        %v300 = vpop.permute.xlu0 %299
        %v301 = vsel %vm270, %v288, %v290
        %v302 = vsel %vm270, %v292, %v294
        %v303 = vsel %vm270, %v298, %v300
        %vm309 = vcmask 785408
        %v311 = vsel %vm309, %v286, 0
        %313 = vmatprep.subr.bf16.mxu0 0
        %314 = vmatpush1.bf16.msra.mxu0 %v271
        %315 = vmatprep.subr.bf16.mxu0 0
        %316 = vmatpush1.bf16.msra.mxu0 %v301
        %317 = vmatprep.subr.bf16.mxu0 0
        %318 = vmatpush1.bf16.msra.mxu0 %v302
        %319 = vmatprep.subr.bf16.mxu0 0
        %320 = vmatpush1.bf16.msra.mxu0 %v296
        %321 = vmatprep.subr.bf16.mxu0 0
        %322 = vmatpush1.bf16.msra.mxu0 %v301
        %323 = vmatprep.subr.bf16.mxu0 0
        %324 = vmatpush1.bf16.msra.mxu0 %v303
        %325 = vmatprep.subr.bf16.mxu0 0
        %326 = vmatpush1.bf16.msra.mxu0 0
        %327 = vmatprep.subr.bf16.mxu0 0
        %328 = vmatpush1.bf16.msra.mxu0 0
        %329 = vmatprep.subr.bf16.mxu0 0
        %330 = vmatpush1.bf16.msra.mxu0 0
        %331 = vmatprep.subr.bf16.mxu0 0
        %332 = vmatpush1.bf16.msra.mxu0 0
        %333 = vmatprep.subr.bf16.mxu0 0
        %334 = vmatpush1.bf16.msra.mxu0 0
        %335 = vmatprep.subr.bf16.mxu0 0
        %336 = vmatpush1.bf16.msra.mxu0 0
        %337 = vmatprep.subr.bf16.mxu0 0
        %338 = vmatpush1.bf16.msra.mxu0 0
        %339 = vmatprep.subr.bf16.mxu0 0
        %340 = vmatpush1.bf16.msra.mxu0 0
        %341 = vmatprep.subr.bf16.mxu0 0
        %342 = vmatpush1.bf16.msra.mxu0 0
        %343 = vmatprep.subr.bf16.mxu0 0
        %344 = vmatpush1.bf16.msra.mxu0 0
        %345 = vmatprep.mubr.bf16.mxu0 0
        %346 = vmatmul.mubr.bf16.gmra.mrb[0].mxu0 %v311
        %v347 = vpop.f32.mrb[0].mxu0
        %v348 = vadd.f32 0.0, %v347
        %v349 = vpop.f32.mrb[0].mxu0
        %v350 = vpop.f32.mrb[0].mxu0
        %v351 = vpop.f32.mrb[0].mxu0
        %352 = vdwg.mxu0
        %s353 = smul.u32 %s25, 128
        %v354 = vlaneseq
        %v355 = vand.u32 %v354, 127
        %v356 = vstv %s353
        %v357 = vadd.s32 %v356, %v355
        %vm358 = vcmp.lt.s32.totalorder %v357, 16
        %v359 = vsel %vm358, 1, 0
        %vm360 = vcmp.eq.s32.totalorder %v359, 1
        %v361 = vsel %vm360, %v348, 0.0
        %362 = vadd.xlane.f32.xlu0 %v361
        %v363 = vpop.xlane.xlu0 %362
        %v364 = vmul.f32 %v361, %v361
        %365 = vadd.xlane.f32.xlu0 %v364
        %v366 = vpop.xlane.xlu0 %365
        %vm367 = vcmask 7168
        %v368 = vsel %vm367, %v363, %v366
        %p369 = scmp.eq.s32.totalorder %s25, 0
        // Predicated region
        $region41: #{tpu_custom_call.1} parent=31 // pred_check
          %p370 = pneg %p369
        $region42: #{tpu_custom_call.1} parent=31 // pred_check_branch
          %372 = sbr.rel (%p370) target = $region44
        $region43: #{tpu_custom_call.1} parent=31 // pred_region
          %vm373 = vcmask 15360
          %374 = vst.msk [vmem:[%s250] sm:$0xff] %vm373, 0.0
        $region44: #{tpu_custom_call.1} parent=31 // pred_fallthru
          _
        %v375 = vld [vmem:[%s250] sm:$0xff]
        %v376 = vadd.f32 %v375, %v368
        %vm377 = vcmask 15360
        %378 = vst.msk [vmem:[%s250] sm:$0xff] %vm377, %v376
        %p379 = scmp.lt.s32.totalorder %s24, 1
        %s380 = scalar_select %p379, %s24, 1
        %s381 = smul.addr %s380, 8
        %s382 = scalar_lea.vmem %s3, %s381
        // Predicated region
        $region45: #{tpu_custom_call.1} parent=31 // pred_check
          %p383 = pneg %p129
        $region46: #{tpu_custom_call.1} parent=31 // pred_check_branch
          %385 = sbr.rel (%p383) target = $region48
        $region47: #{tpu_custom_call.1} parent=31 // pred_region
          _
        $region48: #{tpu_custom_call.1} parent=31 // pred_fallthru
          _
      $region32: #{tpu_custom_call.1} parent=5 // pred_fallthru
        _
      %p386 = scmp.le.s32.totalorder 2, %s15
      // Predicated region
      $region49: #{tpu_custom_call.1} parent=5 // pred_check
        %p387 = pneg %p386
      $region50: #{tpu_custom_call.1} parent=5 // pred_check_branch
        %389 = sbr.rel (%p387) target = $region52
      $region51: #{tpu_custom_call.1} parent=5 // pred_region
        %s390 = ssub.s32 %s15, 2
        // Predicated region
        $region53: #{tpu_custom_call.1} parent=51 // pred_check
          %p391 = pneg %p135
        $region54: #{tpu_custom_call.1} parent=51 // pred_check_branch
          %393 = sbr.rel (%p391) target = $region56
        $region55: #{tpu_custom_call.1} parent=51 // pred_region
          %p394 = scmp.lt.s32.totalorder %s26, 1
          %s395 = scalar_select %p394, %s26, 1
          %s396 = smul.addr %s395, 8
          %s397 = scalar_lea.vmem %s3, %s396
        $region56: #{tpu_custom_call.1} parent=51 // pred_fallthru
          _
      $region52: #{tpu_custom_call.1} parent=5 // pred_fallthru
        _
    $region6: #{tpu_custom_call.1} parent=1 // loop_footer
      %s19 = sadd.s32 1, %s15
    $region7: #{tpu_custom_call.1} parent=1 // loop_footer_branch
      %14 = sbr.rel target = $region3
    $region8: #{tpu_custom_call.1} parent=1 // loop_exit
      _
    %398 = vsyncpa [#allocation3], 1
    %s399 = scalar_lea.sflag [#allocation3], 1
    %400 = vsyncpa %s399, 1
    %401 = vsyncpa [#allocation5], 1
    %s402 = scalar_lea.sflag [#allocation5], 1
    %403 = vsyncpa %s402, 1

</llo_original>
